<compile_context>
chip_gen: v7x
topology: tpu7x:2x2x1
jax: 0.10.0
libtpu: 0.0.40
codegen_flags: <defaults>
</compile_context>

<pallas_src>
import functools

import jax
import jax.numpy as jnp
from jax.experimental import pallas as pl
from jax.experimental.pallas import tpu as pltpu

_LANE = 128


def _round_up(x, m):
    return ((x + m - 1) // m) * m


def _vmem_limit_bytes():
    """Generation-aware VMEM cap: ~80% of physical, never above 100 MiB.

    v5e/v6e (128 MiB physical) -> ~100 MiB; v7x (64 MiB physical) -> ~51 MiB.
    """
    cap = 64 * 1024 * 1024  # conservative default (v7x physical)
    try:
        cap = int(pltpu.get_tpu_info().vmem_capacity_bytes)
    except Exception:
        pass
    return int(min(cap * 0.8, 100 * 1024 * 1024))


def _sage_fused_kernel(a_ref, x_hbm_ref, inv_ref, w_ref, b_ref, o_ref,
                       h_ref, x_sem, *, n_classes):
    """All SAGEConv layers fused; grid axis 0 = layer index.

    a_ref    : [Np, Np]      int8 (0/1), resident, single-buffered
    x_hbm_ref: [Np, Fp]      bf16, left in HBM (memory_space=pl.ANY)
    inv_ref  : [Np, 1]       f32, exact 1/in_degree (precomputed), resident
    w_ref    : [1, Fp, 2*Fp] bf16, per-layer packed [W_self | W_neigh]
    b_ref    : [1, 1, Fp]    f32, per-layer bias
    o_ref    : [Np, Fp]      f32 output (written on the last layer only)
    h_ref    : [Np, Fp]      bf16 VMEM scratch, carries h across layers
    x_sem    : DMA semaphore for the one-time x HBM->VMEM copy
    """
    l = pl.program_id(0)
    last = pl.num_programs(0) - 1
    fp = h_ref.shape[1]

    @pl.when(l == 0)
    def _init():
        # One-time DMA of the (bf16, padded) input features straight into the
        # resident h carry; x never occupies its own pipelined VMEM block.
        cp = pltpu.make_async_copy(x_hbm_ref, h_ref, x_sem)
        cp.start()
        cp.wait()

    h_bf = h_ref[...]                                   # [Np, Fp] bf16

    # Fused self+neigh projection: hw = h @ [W_self | W_neigh].
    # N = 2*Fp = 256 fills the 256-wide MXU on v6e/v7x; no concat copy.
    w = w_ref[0]                                        # [Fp, 2*Fp] bf16
    hw = jnp.dot(h_bf, w, preferred_element_type=jnp.float32)   # [Np, 2*Fp] f32
    self_part = hw[:, :fp]                              # tile-aligned slice
    neigh_pre = hw[:, fp:].astype(jnp.bfloat16)         # h @ W_neigh, bf16 for MXU

    # Mean aggregation reassociated: diag(1/deg) @ (A @ (h @ W_neigh)).
    # A is stored 1-byte; the int8 -> bf16 widen (exact for 0/1) hides under
    # the MXU-bound A @ (.) matmul.
    a_bf = a_ref[...].astype(jnp.bfloat16)
    agg = jnp.dot(a_bf, neigh_pre, preferred_element_type=jnp.float32)

    b = b_ref[0]                                        # [1, Fp] f32
    out = self_part + inv_ref[...] * agg + b            # f32

    @pl.when(l != last)
    def _hidden():
        # ReLU; dropout(p=0.5) is identity in eval mode.
        # TODO(synk): training-mode dropout would use pltpu.prng_random_bits.
        h_ref[...] = jnp.maximum(out, 0.0).astype(jnp.bfloat16)

    @pl.when(l == last)
    def _head():
        # Mask padded class columns so the zero padding does not contribute
        # exp(0) terms to the softmax denominator; log_softmax stays f32.
        col = jax.lax.broadcasted_iota(jnp.int32, out.shape, 1)
        logits = jnp.where(col < n_classes, out, -1e30)
        m = jnp.max(logits, axis=-1, keepdims=True)
        z = logits - m
        lse = jnp.log(jnp.sum(jnp.exp(z), axis=-1, keepdims=True))
        o_ref[...] = (z - lse).astype(o_ref.dtype)


def sage_forward(adj_i8, x_bf16, inv_deg, w_stack, b_stack, n_classes):
    n_layers, fp, _ = w_stack.shape
    np_ = adj_i8.shape[0]
    kernel = functools.partial(_sage_fused_kernel, n_classes=n_classes)
    # Constant-index resident blocks gain nothing from double-buffering.
    single = pl.Buffered(1)
    return pl.pallas_call(
        kernel,
        out_shape=jax.ShapeDtypeStruct((np_, fp), jnp.float32),
        grid_spec=pltpu.PrefetchScalarGridSpec(
            num_scalar_prefetch=0,
            grid=(n_layers,),
            in_specs=[
                pl.BlockSpec((np_, np_), lambda l: (0, 0),
                             pipeline_mode=single),           # A: int8, resident
                pl.BlockSpec(memory_space=pl.ANY),             # x: stays in HBM
                pl.BlockSpec((np_, 1), lambda l: (0, 0),
                             pipeline_mode=single),            # 1/deg: resident
                pl.BlockSpec((1, fp, 2 * fp), lambda l: (l, 0, 0)),  # W_l streamed
                pl.BlockSpec((1, 1, fp), lambda l: (l, 0, 0)),       # b_l streamed
            ],
            out_specs=pl.BlockSpec((np_, fp), lambda l: (0, 0),
                                   pipeline_mode=single),
            scratch_shapes=[
                pltpu.VMEM((np_, fp), jnp.bfloat16),   # h carry (bf16, resident)
                pltpu.SemaphoreType.DMA,               # sem for the one-time x DMA
            ],
        ),
        compiler_params=pltpu.CompilerParams(
            # Layer axis carries state (h scratch) -> sequential.
            dimension_semantics=("arbitrary",),
            vmem_limit_bytes=_vmem_limit_bytes(),
        ),
    )(adj_i8, x_bf16, inv_deg, w_stack, b_stack)


class SAGE:
    """JAX/Pallas port of models/dgl.py::SAGE (forward_full path, eval mode)."""

    def __init__(self, in_feats, n_hidden, n_classes, n_layers, key):
        self.n_layers = n_layers
        self.n_classes = n_classes
        dims = [in_feats] + [n_hidden] * (n_layers - 1) + [n_classes]
        # One lane-dense padded feature width shared by every layer.
        self.f_pad = _round_up(max(dims), _LANE)
        ws, bs, refs = [], [], []
        for l in range(n_layers):
            f_in, f_out = dims[l], dims[l + 1]
            key, k1, k2 = jax.random.split(key, 3)
            # Xavier-uniform-ish deterministic init (matches SAGEConv shapes).
            bound = (6.0 / (f_in + f_out)) ** 0.5
            w_self = jax.random.uniform(k1, (f_in, f_out), jnp.float32, -bound, bound)
            w_neigh = jax.random.uniform(k2, (f_in, f_out), jnp.float32, -bound, bound)
            bias = jnp.zeros((f_out,), jnp.float32)
            # Pack [W_self | W_neigh] HORIZONTALLY into one [Fp, 2*Fp] matrix:
            # columns [0, Fp) = self path, [Fp, 2*Fp) = pre-aggregation
            # neighbour path (aggregation is applied after this matmul).
            w = jnp.zeros((self.f_pad, 2 * self.f_pad), jnp.float32)
            w = w.at[:f_in, :f_out].set(w_self)
            w = w.at[:f_in, self.f_pad:self.f_pad + f_out].set(w_neigh)
            b = jnp.zeros((1, self.f_pad), jnp.float32).at[0, :f_out].set(bias)
            ws.append(w)
            bs.append(b)
            refs.append((w_self, w_neigh, bias))
        self.w_stack = jnp.stack(ws).astype(jnp.bfloat16)   # [L, Fp, 2*Fp] bf16
        self.b_stack = jnp.stack(bs)                          # [L, 1, Fp]    f32
        self._ref_params = refs                               # unpadded f32 (checks)

    def __call__(self, adj, x):
        n = adj.shape[0]
        n_pad = _round_up(n, _LANE)
        # 1-byte adjacency (0/1 exact); widened to bf16 inside the kernel.
        # TODO(synk): for graphs whose padded adjacency no longer fits VMEM
        # (Np >~ 4k on v7x), add a destination-row-tile grid axis and stream A
        # as [TILE_M, Np] slabs with a ping-pong h_next scratch.
        a = jnp.zeros((n_pad, n_pad), jnp.int8)
        a = a.at[:n, :n].set(adj.astype(jnp.int8))
        # Exact 1/in_degree, computed once outside the kernel (graph structure
        # only).  Zero-degree rows clamp to 1 (neigh = 0), matching DGL's mean
        # reducer for isolated nodes.
        deg = jnp.sum(adj.astype(jnp.float32), axis=1, keepdims=True)
        inv = 1.0 / jnp.maximum(deg, 1.0)
        inv_pad = jnp.zeros((n_pad, 1), jnp.float32).at[:n, :].set(inv)
        # Input features in bf16 (h is carried in bf16 inside the kernel).
        h0 = jnp.zeros((n_pad, self.f_pad), jnp.bfloat16)
        h0 = h0.at[:n, :x.shape[1]].set(x.astype(jnp.bfloat16))
        out = sage_forward(a, h0, inv_pad, self.w_stack, self.b_stack,
                           self.n_classes)
        return out[:n, :self.n_classes]


def _reference_forward(adj, x, params, n_layers):
    """Pure-JAX f32 reference of the DGL SAGEConv 'mean' stack (eval mode)."""
    deg = jnp.maximum(jnp.sum(adj, axis=1, keepdims=True), 1.0)
    h = x
    for l, (w_s, w_n, b) in enumerate(params):
        neigh = (adj @ h) / deg
        h = h @ w_s + neigh @ w_n + b
        if l != n_layers - 1:
            h = jnp.maximum(h, 0.0)
    return jax.nn.log_softmax(h, axis=-1)


if __name__ == "__main__":
    key = jax.random.PRNGKey(0)
    k_graph, k_feat, k_param = jax.random.split(key, 3)

    # Small synthetic graph: N nodes, dense {0,1} adjacency, features [N, in_feats].
    N, IN_FEATS, N_HIDDEN, N_CLASSES, N_LAYERS = 16, 8, 16, 8, 3

    adj = (jax.random.uniform(k_graph, (N, N)) < 0.3).astype(jnp.float32)
    x = jax.random.normal(k_feat, (N, IN_FEATS), jnp.float32)

    model = SAGE(IN_FEATS, N_HIDDEN, N_CLASSES, N_LAYERS, k_param)

    out = jax.block_until_ready(model(adj, x))

    assert out.shape == (N, N_CLASSES)
    # log_softmax rows should exp-sum to ~1.
    assert bool(jnp.allclose(jnp.sum(jnp.exp(out), axis=-1), 1.0, atol=1e-3))
    # Parity with the pure-JAX f32 reference (loose tolerance: bf16 activations).
    ref = _reference_forward(adj, x, model._ref_params, N_LAYERS)
    assert bool(jnp.allclose(out, ref, atol=0.1, rtol=0.1))
    print("KERNEL_OK")
</pallas_src>

<mosaic_0001>
module attributes {stable_mosaic.version = 11 : i64} {
  func.func @_sage_fused_kernel(%arg0: i32, %arg1: memref<128x128xi8, #tpu.memory_space<vmem>>, %arg2: memref<128x128xbf16, #tpu.memory_space<any>>, %arg3: memref<128x1xf32, #tpu.memory_space<vmem>>, %arg4: memref<1x128x256xbf16, #tpu.memory_space<vmem>>, %arg5: memref<1x1x128xf32, #tpu.memory_space<vmem>>, %arg6: memref<128x128xf32, #tpu.memory_space<vmem>>, %arg7: memref<128x128xbf16, #tpu.memory_space<vmem>>, %arg8: memref<!tpu.dma_semaphore, #tpu.memory_space<semaphore_mem>>) attributes {dimension_semantics = [#tpu.dimension_semantics<arbitrary>], iteration_bounds = array<i64: 3>, scalar_prefetch = 0 : i64, scratch_operands = 2 : i64, tpu.core_type = #tpu.core_type<tc>, window_params = [{pipeline_mode = #tpu.pipeline_mode<synchronous>, transform_indices = @transform_0, window_bounds = array<i64: 128, 128>}, {}, {pipeline_mode = #tpu.pipeline_mode<synchronous>, transform_indices = @transform_2, window_bounds = array<i64: 128, 1>}, {transform_indices = @transform_3, window_bounds = array<i64: 1, 128, 256>}, {transform_indices = @transform_4, window_bounds = array<i64: 1, 1, 128>}, {pipeline_mode = #tpu.pipeline_mode<synchronous>, transform_indices = @transform_5, window_bounds = array<i64: 128, 128>}]} {
    %c0_i32 = arith.constant 0 : i32
    %0 = arith.cmpi eq, %arg0, %c0_i32 : i32
    %1 = arith.extui %0 : i1 to i32
    %c0_i32_0 = arith.constant 0 : i32
    %2 = arith.cmpi ne, %1, %c0_i32_0 : i32
    scf.if %2 {
      tpu.enqueue_dma source(%arg2 : memref<128x128xbf16, #tpu.memory_space<any>>) target(%arg7 : memref<128x128xbf16, #tpu.memory_space<vmem>>) target_semaphore(%arg8 : memref<!tpu.dma_semaphore, #tpu.memory_space<semaphore_mem>>)
      tpu.wait_dma2 semaphore(%arg8 : memref<!tpu.dma_semaphore, #tpu.memory_space<semaphore_mem>>) src(%arg2 : memref<128x128xbf16, #tpu.memory_space<any>>) dst(%arg7 : memref<128x128xbf16, #tpu.memory_space<vmem>>)
    } else {
    }
    %c0 = arith.constant 0 : index
    %c0_1 = arith.constant 0 : index
    %3 = vector.load %arg7[%c0, %c0_1] : memref<128x128xbf16, #tpu.memory_space<vmem>>, vector<128x128xbf16>
    %c0_2 = arith.constant 0 : index
    %c0_3 = arith.constant 0 : index
    %c0_4 = arith.constant 0 : index
    %4 = vector.load %arg4[%c0_2, %c0_3, %c0_4] : memref<1x128x256xbf16, #tpu.memory_space<vmem>>, vector<1x128x256xbf16>
    %5 = vector.shape_cast %4 : vector<1x128x256xbf16> to vector<128x256xbf16>
    %cst = arith.constant dense<0.000000e+00> : vector<128x256xf32>
    %6 = tpu.matmul %3, %5, %cst {dimension_numbers = #tpu.dot_dimension_numbers<[1], [0], [0], [1], [0, 0, 1, 1], [], []>} : vector<128x128xbf16>, vector<128x256xbf16>, vector<128x256xf32> -> vector<128x256xf32>
    %7 = vector.extract_strided_slice %6 {offsets = [0, 0], sizes = [128, 128], strides = [1, 1]} : vector<128x256xf32> to vector<128x128xf32>
    %8 = vector.extract_strided_slice %6 {offsets = [0, 128], sizes = [128, 128], strides = [1, 1]} : vector<128x256xf32> to vector<128x128xf32>
    %9 = arith.truncf %8 : vector<128x128xf32> to vector<128x128xbf16>
    %c0_5 = arith.constant 0 : index
    %c0_6 = arith.constant 0 : index
    %10 = vector.load %arg1[%c0_5, %c0_6] : memref<128x128xi8, #tpu.memory_space<vmem>>, vector<128x128xi8>
    %11 = arith.sitofp %10 : vector<128x128xi8> to vector<128x128xbf16>
    %cst_7 = arith.constant dense<0.000000e+00> : vector<128x128xf32>
    %12 = tpu.matmul %11, %9, %cst_7 {dimension_numbers = #tpu.dot_dimension_numbers<[1], [0], [0], [1], [0, 0, 1, 1], [], []>} : vector<128x128xbf16>, vector<128x128xbf16>, vector<128x128xf32> -> vector<128x128xf32>
    %c0_8 = arith.constant 0 : index
    %c0_9 = arith.constant 0 : index
    %c0_10 = arith.constant 0 : index
    %13 = vector.load %arg5[%c0_8, %c0_9, %c0_10] : memref<1x1x128xf32, #tpu.memory_space<vmem>>, vector<1x1x128xf32>
    %14 = vector.shape_cast %13 : vector<1x1x128xf32> to vector<1x128xf32>
    %c0_11 = arith.constant 0 : index
    %c0_12 = arith.constant 0 : index
    %15 = vector.load %arg3[%c0_11, %c0_12] : memref<128x1xf32, #tpu.memory_space<vmem>>, vector<128x1xf32>
    %16 = vector.broadcast %15 : vector<128x1xf32> to vector<128x128xf32>
    %17 = arith.mulf %16, %12 : vector<128x128xf32>
    %18 = arith.addf %7, %17 : vector<128x128xf32>
    %19 = vector.broadcast %14 : vector<1x128xf32> to vector<128x128xf32>
    %20 = arith.addf %18, %19 : vector<128x128xf32>
    %c2_i32 = arith.constant 2 : i32
    %21 = arith.cmpi ne, %arg0, %c2_i32 : i32
    %22 = arith.extui %21 : i1 to i32
    %c0_i32_13 = arith.constant 0 : i32
    %23 = arith.cmpi ne, %22, %c0_i32_13 : i32
    scf.if %23 {
      %cst_16 = arith.constant 0.000000e+00 : f32
      %27 = vector.broadcast %cst_16 : f32 to vector<128x128xf32>
      %28 = arith.maximumf %20, %27 : vector<128x128xf32>
      %29 = arith.truncf %28 : vector<128x128xf32> to vector<128x128xbf16>
      %c0_17 = arith.constant 0 : index
      %c0_18 = arith.constant 0 : index
      %30 = vector.load %arg7[%c0_17, %c0_18] : memref<128x128xbf16, #tpu.memory_space<vmem>>, vector<128x128xbf16>
      tpu.vector_store %arg7[%c0_17, %c0_18], %29 {strides = array<i32>} : memref<128x128xbf16, #tpu.memory_space<vmem>>, vector<128x128xbf16>,
    } else {
    }
    %c2_i32_14 = arith.constant 2 : i32
    %24 = arith.cmpi eq, %arg0, %c2_i32_14 : i32
    %25 = arith.extui %24 : i1 to i32
    %c0_i32_15 = arith.constant 0 : i32
    %26 = arith.cmpi ne, %25, %c0_i32_15 : i32
    scf.if %26 {
      %27 = tpu.iota {dimensions = array<i32: 1>} : vector<128x128xi32>
      %c8_i32 = arith.constant 8 : i32
      %28 = vector.broadcast %c8_i32 : i32 to vector<128x128xi32>
      %29 = arith.cmpi slt, %27, %28 : vector<128x128xi32>
      %cst_16 = arith.constant -1.000000e+30 : f32
      %30 = vector.broadcast %cst_16 : f32 to vector<128x128xf32>
      %31 = arith.select %29, %20, %30 : vector<128x128xi1>, vector<128x128xf32>
      %cst_17 = arith.constant dense<0xFF800000> : vector<128xf32>
      %32 = vector.multi_reduction <maximumf>, %31, %cst_17 [1] : vector<128x128xf32> to vector<128xf32>
      %33 = vector.shape_cast %32 : vector<128xf32> to vector<128x1xf32>
      %34 = vector.broadcast %33 : vector<128x1xf32> to vector<128x128xf32>
      %35 = arith.subf %31, %34 : vector<128x128xf32>
      %36 = math.exp %35 : vector<128x128xf32>
      %cst_18 = arith.constant dense<0.000000e+00> : vector<128xf32>
      %37 = vector.multi_reduction <add>, %36, %cst_18 [1] : vector<128x128xf32> to vector<128xf32>
      %38 = vector.shape_cast %37 : vector<128xf32> to vector<128x1xf32>
      %39 = math.log %38 : vector<128x1xf32>
      %40 = vector.broadcast %39 : vector<128x1xf32> to vector<128x128xf32>
      %41 = arith.subf %35, %40 : vector<128x128xf32>
      %c0_19 = arith.constant 0 : index
      %c0_20 = arith.constant 0 : index
      %42 = vector.load %arg6[%c0_19, %c0_20] : memref<128x128xf32, #tpu.memory_space<vmem>>, vector<128x128xf32>
      tpu.vector_store %arg6[%c0_19, %c0_20], %41 {strides = array<i32>} : memref<128x128xf32, #tpu.memory_space<vmem>>, vector<128x128xf32>,
    } else {
    }
    return
  }
  func.func @transform_0(%arg0: i32) -> (i32, i32) {
    %c0_i32 = arith.constant 0 : i32
    %c0_i32_0 = arith.constant 0 : i32
    %c0_i32_1 = arith.constant 0 : i32
    return %c0_i32, %c0_i32_0 : i32, i32
  }
  func.func @transform_2(%arg0: i32) -> (i32, i32) {
    %c0_i32 = arith.constant 0 : i32
    %c0_i32_0 = arith.constant 0 : i32
    %c0_i32_1 = arith.constant 0 : i32
    return %c0_i32, %c0_i32_0 : i32, i32
  }
  func.func @transform_3(%arg0: i32) -> (i32, i32, i32) {
    %c0_i32 = arith.constant 0 : i32
    %c0_i32_0 = arith.constant 0 : i32
    %c0_i32_1 = arith.constant 0 : i32
    return %arg0, %c0_i32, %c0_i32_0 : i32, i32, i32
  }
  func.func @transform_4(%arg0: i32) -> (i32, i32, i32) {
    %c0_i32 = arith.constant 0 : i32
    %c0_i32_0 = arith.constant 0 : i32
    %c0_i32_1 = arith.constant 0 : i32
    return %arg0, %c0_i32, %c0_i32_0 : i32, i32, i32
  }
  func.func @transform_5(%arg0: i32) -> (i32, i32) {
    %c0_i32 = arith.constant 0 : i32
    %c0_i32_0 = arith.constant 0 : i32
    %c0_i32_1 = arith.constant 0 : i32
    return %c0_i32, %c0_i32_0 : i32, i32
  }
}

</mosaic_0001>

<llo_original>
// kernel: tpu_custom_call.1
$region0: #{tpu_custom_call.1}
  #allocation0 [shape = 'u32[]', space=smem, size = 0x4, offset = 0x4, fixed_abs, tag = 'smem constant byte address 0x4 - core index']
  #allocation1 [shape = 'u32[144,128]{1,0:T(1,128)}', space=vmem, size = 0x12000, scoped, tag = 'internal scratch']
  #allocation2 [shape = 'bf16[128,128]{1,0:T(16,128)(2,1)}', space=vmem, size = 0x8000, scoped, tag = 'scratch operand']
  #allocation3 [shape = 's32[1]{0}', space=sflag, size = 0x4, scoped, tag = 'scratch operand']
  #allocation8 [shape = 's32[]', space=sflag, size = 0x4, offset = 0, fixed_abs, tag = 'sflag constant byte address 0x0 - dummy sync flag']
  %s0 = inlined_call_operand.vmem [shape: s8[128,128], index: 0, kind: input, shape index: {}]
  %s1 = inlined_call_operand.vmem [shape: bf16[128,128], index: 1, kind: input, shape index: {}]
  %s2 = inlined_call_operand.vmem [shape: f32[128,1], index: 2, kind: input, shape index: {}]
  %s3 = inlined_call_operand.hbm [shape: bf16[3,128,256], index: 3, kind: input, shape index: {}]
  %s4 = inlined_call_operand.vmem [shape: f32[3,1,128], index: 4, kind: input, shape index: {}]
  %s5 = inlined_call_operand.hbm [shape: f32[128,128], index: 5, kind: output, shape index: {}]
  %s6 = sld [smem:[#allocation0]]
  $region99: #{tpu_custom_call.1} parent=0
    _
  %s8 = ssub.s32 1, %s6
  %s9 = scalar_select 0, %s8, %s6
  $region1: #{tpu_custom_call.1} parent=0
    #allocation4 [shape = 'u8[131072]{0}', space=vmem, size = 0x20000, scoped, tag = 'input window, operand 3']
    #allocation5 [shape = 's32[2]{0}', space=sflag, size = 0x8, scoped, tag = 'scoped memory for tpu_custom_call.1']
    #allocation6 [shape = 's32[2]{0}', space=sflag, size = 0x8, scoped, tag = 'scoped memory for tpu_custom_call.1']
    #allocation7 [shape = 'u8[65536]{0}', space=vmem, size = 0x10000, scoped, tag = 'output window, operand 0, single buffered']
    %10 = vsyncpa [#allocation5], 0
    %s11 = scalar_lea.sflag [#allocation5], 1
    %12 = vsyncpa %s11, 0
    %13 = vsyncpa [#allocation6], 0
    loop: start=0, step=1, limit=5
    $region2: #{tpu_custom_call.1} parent=1 // loop_pre_header
      _
    $region3: #{tpu_custom_call.1} parent=1 // loop_header
      %s15 = sphi 0, %s19
      %p16 = scmp.ge.s32.totalorder %s15, 5
      %s23 = sphi 0, %s23
      %s25 = sphi 0, %s23
      %s26 = sphi 0, %s25
      %s40 = sphi 0, %s26
      %s44 = sphi 0, %s44
      %s46 = sphi 0, %s44
      %s47 = sphi 0, %s46
      %s61 = sphi 0, %s47
      %s67 = sphi 0, %s69
      %s70 = sphi 0, %s67
      %s71 = sphi 0, %s70
      %s87 = sphi 0, %s71
      %s93 = sphi 0, %s95
      %s96 = sphi 0, %s93
      %s97 = sphi 0, %s96
      %s113 = sphi 0, %s97
      %s117 = sphi 0, %s117
      %s119 = sphi 0, %s117
      %s120 = sphi 0, %s119
      %s134 = sphi 0, %s120
    $region4: #{tpu_custom_call.1} parent=1 // loop_header_branch
      %18 = sbr.rel (%p16) target = $region8
    $region5: #{tpu_custom_call.1} parent=1 // loop_body
      %s20 = ssub.s32 %s15, 1
      %s21 = ssub.s32 %s15, 2
      %s22 = sadd.s32 %s15, 1
      %s24 = sadd.s32 %s23, 1
      %p27 = scmp.eq.s32.totalorder %s15, 2
      %p28 = scmp.ne.s32.totalorder %s23, %s25
      %p29 = scmp.eq.s32.totalorder %s15, 0
      %p30 = por %p28, %p29
      %p31 = scmp.ne.s32.totalorder %s23, %s25
      %p32 = scmp.eq.s32.totalorder %s20, 2
      %p33 = por %p31, %p32
      %p34 = scmp.ne.s32.totalorder %s25, %s26
      %p35 = scmp.eq.s32.totalorder %s20, 0
      %p36 = por %p34, %p35
      %p37 = scmp.ne.s32.totalorder %s25, %s26
      %p38 = scmp.eq.s32.totalorder %s21, 2
      %p39 = por %p37, %p38
      %p41 = scmp.ne.s32.totalorder %s26, %s40
      %p42 = scmp.eq.s32.totalorder %s21, 0
      %p43 = por %p41, %p42
      %s45 = sadd.s32 %s44, 1
      %p48 = scmp.eq.s32.totalorder %s15, 2
      %p49 = scmp.ne.s32.totalorder %s44, %s46
      %p50 = scmp.eq.s32.totalorder %s15, 0
      %p51 = por %p49, %p50
      %p52 = scmp.ne.s32.totalorder %s44, %s46
      %p53 = scmp.eq.s32.totalorder %s20, 2
      %p54 = por %p52, %p53
      %p55 = scmp.ne.s32.totalorder %s46, %s47
      %p56 = scmp.eq.s32.totalorder %s20, 0
      %p57 = por %p55, %p56
      %p58 = scmp.ne.s32.totalorder %s46, %s47
      %p59 = scmp.eq.s32.totalorder %s21, 2
      %p60 = por %p58, %p59
      %p62 = scmp.ne.s32.totalorder %s47, %s61
      %p63 = scmp.eq.s32.totalorder %s21, 0
      %p64 = por %p62, %p63
      %s65 = ssub.s32 %s15, %s22
      %p66 = scmp.eq.s32.totalorder %s65, 0
      %s68 = sadd.s32 %s67, 1
      %s69 = scalar_select %p66, %s67, %s68
      %p72 = pneg %p66
      %p73 = scmp.eq.s32.totalorder %s15, 2
      %p74 = por %p72, %p73
      %p75 = scmp.ne.s32.totalorder %s67, %s70
      %p76 = scmp.eq.s32.totalorder %s15, 0
      %p77 = por %p75, %p76
      %p78 = scmp.ne.s32.totalorder %s67, %s70
      %p79 = scmp.eq.s32.totalorder %s20, 2
      %p80 = por %p78, %p79
      %p81 = scmp.ne.s32.totalorder %s70, %s71
      %p82 = scmp.eq.s32.totalorder %s20, 0
      %p83 = por %p81, %p82
      %p84 = scmp.ne.s32.totalorder %s70, %s71
      %p85 = scmp.eq.s32.totalorder %s21, 2
      %p86 = por %p84, %p85
      %p88 = scmp.ne.s32.totalorder %s71, %s87
      %p89 = scmp.eq.s32.totalorder %s21, 0
      %p90 = por %p88, %p89
      %s91 = ssub.s32 %s15, %s22
      %p92 = scmp.eq.s32.totalorder %s91, 0
      %s94 = sadd.s32 %s93, 1
      %s95 = scalar_select %p92, %s93, %s94
      %p98 = pneg %p92
      %p99 = scmp.eq.s32.totalorder %s15, 2
      %p100 = por %p98, %p99
      %p101 = scmp.ne.s32.totalorder %s93, %s96
      %p102 = scmp.eq.s32.totalorder %s15, 0
      %p103 = por %p101, %p102
      %p104 = scmp.ne.s32.totalorder %s93, %s96
      %p105 = scmp.eq.s32.totalorder %s20, 2
      %p106 = por %p104, %p105
      %p107 = scmp.ne.s32.totalorder %s96, %s97
      %p108 = scmp.eq.s32.totalorder %s20, 0
      %p109 = por %p107, %p108
      %p110 = scmp.ne.s32.totalorder %s96, %s97
      %p111 = scmp.eq.s32.totalorder %s21, 2
      %p112 = por %p110, %p111
      %p114 = scmp.ne.s32.totalorder %s97, %s113
      %p115 = scmp.eq.s32.totalorder %s21, 0
      %p116 = por %p114, %p115
      %s118 = sadd.s32 %s117, 1
      %p121 = scmp.eq.s32.totalorder %s15, 2
      %p122 = scmp.ne.s32.totalorder %s117, %s119
      %p123 = scmp.eq.s32.totalorder %s15, 0
      %p124 = por %p122, %p123
      %p125 = scmp.ne.s32.totalorder %s117, %s119
      %p126 = scmp.eq.s32.totalorder %s20, 2
      %p127 = por %p125, %p126
      %p128 = scmp.ne.s32.totalorder %s119, %s120
      %p129 = scmp.eq.s32.totalorder %s20, 0
      %p130 = por %p128, %p129
      %p131 = scmp.ne.s32.totalorder %s119, %s120
      %p132 = scmp.eq.s32.totalorder %s21, 2
      %p133 = por %p131, %p132
      %p135 = scmp.ne.s32.totalorder %s120, %s134
      %p136 = scmp.eq.s32.totalorder %s21, 0
      %p137 = por %p135, %p136
      %p138 = scmp.le.s32.totalorder 1, %s15
      %p139 = scmp.lt.s32.totalorder %s15, 4
      %p140 = pnand %p138, %p139
      %p141 = pneg %p140
      // Predicated region
      $region9: #{tpu_custom_call.1} parent=5 // pred_check
        _
      $region10: #{tpu_custom_call.1} parent=5 // pred_check_branch
        %143 = sbr.rel (%p140) target = $region12
      $region11: #{tpu_custom_call.1} parent=5 // pred_region
        %s144 = ssub.s32 %s15, 1
        // Predicated region
        $region13: #{tpu_custom_call.1} parent=11 // pred_check
          %p145 = pneg %p36
        $region14: #{tpu_custom_call.1} parent=11 // pred_check_branch
          %147 = sbr.rel (%p145) target = $region16
        $region15: #{tpu_custom_call.1} parent=11 // pred_region
          _
        $region16: #{tpu_custom_call.1} parent=11 // pred_fallthru
          _
        // Predicated region
        $region17: #{tpu_custom_call.1} parent=11 // pred_check
          %p148 = pneg %p57
        $region18: #{tpu_custom_call.1} parent=11 // pred_check_branch
          %150 = sbr.rel (%p148) target = $region20
        $region19: #{tpu_custom_call.1} parent=11 // pred_region
          _
        $region20: #{tpu_custom_call.1} parent=11 // pred_fallthru
          _
      $region12: #{tpu_custom_call.1} parent=5 // pred_fallthru
        _
      %p151 = scmp.lt.s32.totalorder %s15, 3
      // Predicated region
      $region21: #{tpu_custom_call.1} parent=5 // pred_check
        %p152 = pneg %p151
      $region22: #{tpu_custom_call.1} parent=5 // pred_check_branch
        %154 = sbr.rel (%p152) target = $region24
      $region23: #{tpu_custom_call.1} parent=5 // pred_region
        // Predicated region
        $region25: #{tpu_custom_call.1} parent=23 // pred_check
          %p155 = pneg %p77
        $region26: #{tpu_custom_call.1} parent=23 // pred_check_branch
          %157 = sbr.rel (%p155) target = $region28
        $region27: #{tpu_custom_call.1} parent=23 // pred_region
          %s158 = sand.u32 %s67, 1
          %s159 = scalar_lea.sflag [#allocation5], %s158
          %s160 = sand.u32 %s67, 1
          %s161 = smul.addr %s160, 128
          %s162 = scalar_lea.vmem [#allocation4], %s161
          %s164 = ssub.s32 2048, 2048
          %165 = vsyncadd %s159, %s164
          %s166 = smul.addr %s15, 32
          %s167 = smul.addr %s166, 64
          %s168 = scalar_lea.hbm %s3, %s167
          %s169 = sshll.u32 %s162, 4
          %s170 = int_to_ptr.vmem [resolvable:$true] %s169
          %175 = dma.hbm_to_vmem [thread:$0]  %s168, 2048, %s170, %s159, 128, 128, 8
        $region28: #{tpu_custom_call.1} parent=23 // pred_fallthru
          _
        // Predicated region
        $region29: #{tpu_custom_call.1} parent=23 // pred_check
          %p176 = pneg %p103
        $region30: #{tpu_custom_call.1} parent=23 // pred_check_branch
          %178 = sbr.rel (%p176) target = $region32
        $region31: #{tpu_custom_call.1} parent=23 // pred_region
          %p179 = scmp.lt.s32.totalorder %s15, 2
          %s180 = scalar_select %p179, %s15, 2
          %s181 = scalar_lea.vmem %s4, %s180
        $region32: #{tpu_custom_call.1} parent=23 // pred_fallthru
          _
      $region24: #{tpu_custom_call.1} parent=5 // pred_fallthru
        _
      %p182 = scmp.le.s32.totalorder 1, %s15
      %p183 = scmp.lt.s32.totalorder %s15, 4
      %p184 = pnand %p182, %p183
      %p185 = pneg %p184
      // Predicated region
      $region33: #{tpu_custom_call.1} parent=5 // pred_check
        _
      $region34: #{tpu_custom_call.1} parent=5 // pred_check_branch
        %187 = sbr.rel (%p184) target = $region36
      $region35: #{tpu_custom_call.1} parent=5 // pred_region
        %s188 = ssub.s32 %s15, 1
        %s189 = sand.u32 %s70, 1
        %s190 = scalar_lea.sflag [#allocation5], %s189
        %s191 = sand.u32 %s70, 1
        %s192 = smul.addr %s191, 128
        %s193 = scalar_lea.vmem [#allocation4], %s192
        // Predicated region
        $region37: #{tpu_custom_call.1} parent=35 // pred_check
          %p194 = pneg %p83
        $region38: #{tpu_custom_call.1} parent=35 // pred_check_branch
          %196 = sbr.rel (%p194) target = $region40
        $region39: #{tpu_custom_call.1} parent=35 // pred_region
          %197 = dma.done %s190, 2048
        $region40: #{tpu_custom_call.1} parent=35 // pred_fallthru
          _
        %p198 = pneg %p36
        %p199 = pneg %p33
        %p200 = pneg %p57
        %p201 = pneg %p54
        %s202 = sand.u32 %s70, 1
        %s203 = scalar_lea.sflag [#allocation5], %s202
        %s204 = sand.u32 %s70, 1
        %s205 = smul.addr %s204, 128
        %s206 = scalar_lea.vmem [#allocation4], %s205
        %p207 = pneg %p83
        %p208 = pneg %p80
        %p209 = scmp.lt.s32.totalorder %s20, 2
        %s210 = scalar_select %p209, %s20, 2
        %s211 = scalar_lea.vmem %s4, %s210
        %p212 = pneg %p109
        %p213 = pneg %p106
        %p214 = pneg %p130
        %p215 = pneg %p127
        %p216 = scmp.lt.s32.totalorder %s20, 2
        %s217 = scalar_select %p216, %s20, 2
        %s218 = scalar_lea.vmem %s4, %s217
        %p220 = scmp.eq.s32.totalorder %s20, 0
        // Predicated region
        $region41: #{tpu_custom_call.1} parent=35 // pred_check
          %p221 = pneg %p220
        $region42: #{tpu_custom_call.1} parent=35 // pred_check_branch
          %223 = sbr.rel (%p221) target = $region44
        $region43: #{tpu_custom_call.1} parent=35 // pred_region
          %p225 = scmp.lt.u32.totalorder 64, 8
          %p226 = pneg %p225
          // Predicated region
          $region45: #{tpu_custom_call.1} parent=43 // pred_check
            _
          $region46: #{tpu_custom_call.1} parent=43 // pred_check_branch
            %228 = sbr.rel (%p225) target = $region48
          $region47: #{tpu_custom_call.1} parent=43 // pred_region
            %s243 = sand.u32 64, 7
            %p244 = scmp.eq.s32.totalorder %s243, 0
            // Predicated region
            $region60: #{tpu_custom_call.1} parent=47 // pred_check
              %p245 = pneg %p244
            $region61: #{tpu_custom_call.1} parent=47 // pred_check_branch
              %247 = sbr.rel (%p245) target = $region63
            $region62: #{tpu_custom_call.1} parent=47 // pred_region
              loop: start=0, step=1, limit=1
              $region64: #{tpu_custom_call.1} parent=62 // loop_pre_header
                _
              $region65: #{tpu_custom_call.1} parent=62 // loop_header
                %s249 = sphi 0, %s253
                %p250 = scmp.ge.s32.totalorder %s249, 1
                %s254 = sphi %s1, %s1
                %s255 = sphi [#allocation2], [#allocation2]
              $region66: #{tpu_custom_call.1} parent=62 // loop_header_branch
                %252 = sbr.rel (%p250) target = $region70
              $region67: #{tpu_custom_call.1} parent=62 // loop_body
                %v256 = vld [vmem:[%s254] sm:$0xff]
                %257 = vst [vmem:[%s255] sm:$0xff] %v256
                %v258 = vld [vmem:[%s254 + $0x8] sm:$0xff]
                %259 = vst [vmem:[%s255 + $0x8] sm:$0xff] %v258
                %v260 = vld [vmem:[%s254 + $0x10] sm:$0xff]
                %261 = vst [vmem:[%s255 + $0x10] sm:$0xff] %v260
                %v262 = vld [vmem:[%s254 + $0x18] sm:$0xff]
                %263 = vst [vmem:[%s255 + $0x18] sm:$0xff] %v262
                %v264 = vld [vmem:[%s254 + $0x20] sm:$0xff]
                %265 = vst [vmem:[%s255 + $0x20] sm:$0xff] %v264
                %v266 = vld [vmem:[%s254 + $0x28] sm:$0xff]
                %267 = vst [vmem:[%s255 + $0x28] sm:$0xff] %v266
                %v268 = vld [vmem:[%s254 + $0x30] sm:$0xff]
                %269 = vst [vmem:[%s255 + $0x30] sm:$0xff] %v268
                %v270 = vld [vmem:[%s254 + $0x38] sm:$0xff]
                %271 = vst [vmem:[%s255 + $0x38] sm:$0xff] %v270
              $region68: #{tpu_custom_call.1} parent=62 // loop_footer
                %s253 = sadd.s32 1, %s249
              $region69: #{tpu_custom_call.1} parent=62 // loop_footer_branch
                %248 = sbr.rel target = $region65
              $region70: #{tpu_custom_call.1} parent=62 // loop_exit
                _
            $region63: #{tpu_custom_call.1} parent=47 // pred_fallthru
              _
            %p272 = pneg %p244
            // Predicated region
            $region71: #{tpu_custom_call.1} parent=47 // pred_check
              _
            $region72: #{tpu_custom_call.1} parent=47 // pred_check_branch
              %274 = sbr.rel (%p244) target = $region74
            $region73: #{tpu_custom_call.1} parent=47 // pred_region
              %s275 = sand.u32 64, 7
            $region74: #{tpu_custom_call.1} parent=47 // pred_fallthru
              _
          $region48: #{tpu_custom_call.1} parent=43 // pred_fallthru
            _
          // Predicated region
          $region49: #{tpu_custom_call.1} parent=43 // pred_check
            %p229 = pneg %p225
          $region50: #{tpu_custom_call.1} parent=43 // pred_check_branch
            %231 = sbr.rel (%p229) target = $region52
          $region51: #{tpu_custom_call.1} parent=43 // pred_region
            %s232 = sshllo.u32 0, 64
            loop: start=0, step=1, limit=1
            $region53: #{tpu_custom_call.1} parent=51 // loop_pre_header
              _
            $region54: #{tpu_custom_call.1} parent=51 // loop_header
              %s234 = sphi 0, %s238
              %p235 = scmp.ge.s32.totalorder %s234, 1
              %s239 = sphi %s1, %s1
              %s240 = sphi [#allocation2], [#allocation2]
            $region55: #{tpu_custom_call.1} parent=51 // loop_header_branch
              %237 = sbr.rel (%p235) target = $region59
            $region56: #{tpu_custom_call.1} parent=51 // loop_body
              %v241 = vld [vmem:[%s239] sm:%s232]
              %242 = vst [vmem:[%s240] sm:%s232] %v241
            $region57: #{tpu_custom_call.1} parent=51 // loop_footer
              %s238 = sadd.s32 1, %s234
            $region58: #{tpu_custom_call.1} parent=51 // loop_footer_branch
              %233 = sbr.rel target = $region54
            $region59: #{tpu_custom_call.1} parent=51 // loop_exit
              _
          $region52: #{tpu_custom_call.1} parent=43 // pred_fallthru
            _
          // Predicated region
          $region75: #{tpu_custom_call.1} parent=43 // pred_check
            _
          $region76: #{tpu_custom_call.1} parent=43 // pred_check_branch
            %278 = sbr.rel (0) target = $region78
          $region77: #{tpu_custom_call.1} parent=43 // pred_region
            %279 = vsyncadd [#allocation3], 1024
          $region78: #{tpu_custom_call.1} parent=43 // pred_fallthru
            _
          %s280 = smul.u32 4, 16
          %s281 = smul.u32 %s280, 1
          %s282 = sshll.u32 %s281, 4
          %283 = dma.done [#allocation3], %s282
        $region44: #{tpu_custom_call.1} parent=35 // pred_fallthru
          _
        %v284 = vld [vmem:[#allocation2] sm:$0xff]
        %v285 = vld [vmem:[#allocation2 + $0x8] sm:$0xff]
        %v286 = vld [vmem:[#allocation2 + $0x10] sm:$0xff]
        %v287 = vld [vmem:[#allocation2 + $0x18] sm:$0xff]
        %v288 = vld [vmem:[#allocation2 + $0x20] sm:$0xff]
        %v289 = vld [vmem:[#allocation2 + $0x28] sm:$0xff]
        %v290 = vld [vmem:[#allocation2 + $0x30] sm:$0xff]
        %v291 = vld [vmem:[#allocation2 + $0x38] sm:$0xff]
        %v292 = vld [vmem:[%s193] sm:$0xff]
        %v293 = vld [vmem:[%s193 + $0x8] sm:$0xff]
        %v294 = vld [vmem:[%s193 + $0x10] sm:$0xff]
        %v295 = vld [vmem:[%s193 + $0x18] sm:$0xff]
        %v296 = vld [vmem:[%s193 + $0x20] sm:$0xff]
        %v297 = vld [vmem:[%s193 + $0x28] sm:$0xff]
        %v298 = vld [vmem:[%s193 + $0x30] sm:$0xff]
        %v299 = vld [vmem:[%s193 + $0x38] sm:$0xff]
        %v300 = vld [vmem:[%s193 + $0x40] sm:$0xff]
        %v301 = vld [vmem:[%s193 + $0x48] sm:$0xff]
        %v302 = vld [vmem:[%s193 + $0x50] sm:$0xff]
        %v303 = vld [vmem:[%s193 + $0x58] sm:$0xff]
        %v304 = vld [vmem:[%s193 + $0x60] sm:$0xff]
        %v305 = vld [vmem:[%s193 + $0x68] sm:$0xff]
        %v306 = vld [vmem:[%s193 + $0x70] sm:$0xff]
        %v307 = vld [vmem:[%s193 + $0x78] sm:$0xff]
        %v324 = vunpack.c.l.b16 %v292
        %v325 = vunpack.c.h.b16 %v292
        %v326 = vunpack.c.l.b16 %v293
        %v327 = vunpack.c.h.b16 %v293
        %v328 = vunpack.c.l.b16 %v294
        %v329 = vunpack.c.h.b16 %v294
        %v330 = vunpack.c.l.b16 %v295
        %v331 = vunpack.c.h.b16 %v295
        %v332 = vunpack.c.l.b16 %v296
        %v333 = vunpack.c.h.b16 %v296
        %v334 = vunpack.c.l.b16 %v297
        %v335 = vunpack.c.h.b16 %v297
        %v336 = vunpack.c.l.b16 %v298
        %v337 = vunpack.c.h.b16 %v298
        %v338 = vunpack.c.l.b16 %v299
        %v339 = vunpack.c.h.b16 %v299
        %v340 = vunpack.c.l.b16 %v300
        %v341 = vunpack.c.h.b16 %v300
        %v342 = vunpack.c.l.b16 %v301
        %v343 = vunpack.c.h.b16 %v301
        %v344 = vunpack.c.l.b16 %v302
        %v345 = vunpack.c.h.b16 %v302
        %v346 = vunpack.c.l.b16 %v303
        %v347 = vunpack.c.h.b16 %v303
        %v348 = vunpack.c.l.b16 %v304
        %v349 = vunpack.c.h.b16 %v304
        %v350 = vunpack.c.l.b16 %v305
        %v351 = vunpack.c.h.b16 %v305
        %v352 = vunpack.c.l.b16 %v306
        %v353 = vunpack.c.h.b16 %v306
        %v354 = vunpack.c.l.b16 %v307
        %v355 = vunpack.c.h.b16 %v307
        %v356 = vpack.c.b16 %v326, %v324
        %v357 = vpack.c.b16 %v327, %v325
        %v358 = vpack.c.b16 %v330, %v328
        %v359 = vpack.c.b16 %v331, %v329
        %v360 = vpack.c.b16 %v334, %v332
        %v361 = vpack.c.b16 %v335, %v333
        %v362 = vpack.c.b16 %v338, %v336
        %v363 = vpack.c.b16 %v339, %v337
        %v364 = vpack.c.b16 %v342, %v340
        %v365 = vpack.c.b16 %v343, %v341
        %v366 = vpack.c.b16 %v346, %v344
        %v367 = vpack.c.b16 %v347, %v345
        %v368 = vpack.c.b16 %v350, %v348
        %v369 = vpack.c.b16 %v351, %v349
        %v370 = vpack.c.b16 %v354, %v352
        %v371 = vpack.c.b16 %v355, %v353
        %388 = vmatprep.subr.bf16.mxu0 %v357
        %389 = vmatpush1.bf16.msra.mxu0 %v356
        %390 = vmatprep.subr.bf16.mxu0 %v359
        %391 = vmatpush1.bf16.msra.mxu0 %v358
        %392 = vmatprep.subr.bf16.mxu0 %v361
        %393 = vmatpush1.bf16.msra.mxu0 %v360
        %394 = vmatprep.subr.bf16.mxu0 %v363
        %395 = vmatpush1.bf16.msra.mxu0 %v362
        %396 = vmatprep.subr.bf16.mxu0 %v365
        %397 = vmatpush1.bf16.msra.mxu0 %v364
        %398 = vmatprep.subr.bf16.mxu0 %v367
        %399 = vmatpush1.bf16.msra.mxu0 %v366
        %400 = vmatprep.subr.bf16.mxu0 %v369
        %401 = vmatpush1.bf16.msra.mxu0 %v368
        %402 = vmatprep.subr.bf16.mxu0 %v371
        %403 = vmatpush1.bf16.msra.mxu0 %v370
        %404 = vmatprep.subr.bf16.mxu0 0
        %405 = vmatpush1.bf16.msra.mxu0 0
        %406 = vmatprep.subr.bf16.mxu0 0
        %407 = vmatpush1.bf16.msra.mxu0 0
        %408 = vmatprep.subr.bf16.mxu0 0
        %409 = vmatpush1.bf16.msra.mxu0 0
        %410 = vmatprep.subr.bf16.mxu0 0
        %411 = vmatpush1.bf16.msra.mxu0 0
        %412 = vmatprep.subr.bf16.mxu0 0
        %413 = vmatpush1.bf16.msra.mxu0 0
        %414 = vmatprep.subr.bf16.mxu0 0
        %415 = vmatpush1.bf16.msra.mxu0 0
        %416 = vmatprep.subr.bf16.mxu0 0
        %417 = vmatpush1.bf16.msra.mxu0 0
        %418 = vmatprep.subr.bf16.mxu0 0
        %419 = vmatpush1.bf16.msra.mxu0 0
        %420 = vmatprep.mubr.bf16.mxu0 0
        %421 = vmatmul.mubr.bf16.gmra.mrb[0].mxu0 %v284
        %v422 = vpop.f32.mrb[0].mxu0
        %v423 = vadd.f32 0.0, %v422
        %v424 = vpop.f32.mrb[0].mxu0
        %v425 = vadd.f32 0.0, %v424
        %v426 = vpop.f32.mrb[0].mxu0
        %v427 = vadd.f32 0.0, %v426
        %v428 = vpop.f32.mrb[0].mxu0
        %v429 = vadd.f32 0.0, %v428
        %430 = vmatprep.mubr.bf16.mxu0 0
        %431 = vmatmul.mubr.bf16.gmra.mrb[0].mxu0 %v285
        %v432 = vpop.f32.mrb[0].mxu0
        %v433 = vadd.f32 0.0, %v432
        %v434 = vpop.f32.mrb[0].mxu0
        %v435 = vadd.f32 0.0, %v434
        %v436 = vpop.f32.mrb[0].mxu0
        %v437 = vadd.f32 0.0, %v436
        %v438 = vpop.f32.mrb[0].mxu0
        %v439 = vadd.f32 0.0, %v438
        %440 = vmatprep.mubr.bf16.mxu0 0
        %441 = vmatmul.mubr.bf16.gmra.mrb[0].mxu0 %v286
        %v442 = vpop.f32.mrb[0].mxu0
        %v443 = vadd.f32 0.0, %v442
        %v444 = vpop.f32.mrb[0].mxu0
        %v445 = vadd.f32 0.0, %v444
        %v446 = vpop.f32.mrb[0].mxu0
        %v447 = vadd.f32 0.0, %v446
        %v448 = vpop.f32.mrb[0].mxu0
        %v449 = vadd.f32 0.0, %v448
        %450 = vmatprep.mubr.bf16.mxu0 0
        %451 = vmatmul.mubr.bf16.gmra.mrb[0].mxu0 %v287
        %v452 = vpop.f32.mrb[0].mxu0
        %v453 = vadd.f32 0.0, %v452
        %v454 = vpop.f32.mrb[0].mxu0
        %v455 = vadd.f32 0.0, %v454
        %v456 = vpop.f32.mrb[0].mxu0
        %v457 = vadd.f32 0.0, %v456
        %v458 = vpop.f32.mrb[0].mxu0
        %v459 = vadd.f32 0.0, %v458
        %460 = vmatprep.mubr.bf16.mxu0 0
        %461 = vmatmul.mubr.bf16.gmra.mrb[0].mxu0 %v288
        %v462 = vpop.f32.mrb[0].mxu0
        %v463 = vadd.f32 0.0, %v462
        %v464 = vpop.f32.mrb[0].mxu0
        %v465 = vadd.f32 0.0, %v464
        %v466 = vpop.f32.mrb[0].mxu0
        %v467 = vadd.f32 0.0, %v466
        %v468 = vpop.f32.mrb[0].mxu0
        %v469 = vadd.f32 0.0, %v468
        %470 = vmatprep.mubr.bf16.mxu0 0
        %471 = vmatmul.mubr.bf16.gmra.mrb[0].mxu0 %v289
        %v472 = vpop.f32.mrb[0].mxu0
        %v473 = vadd.f32 0.0, %v472
        %v474 = vpop.f32.mrb[0].mxu0
        %v475 = vadd.f32 0.0, %v474
        %v476 = vpop.f32.mrb[0].mxu0
        %v477 = vadd.f32 0.0, %v476
        %v478 = vpop.f32.mrb[0].mxu0
        %v479 = vadd.f32 0.0, %v478
        %480 = vmatprep.mubr.bf16.mxu0 0
        %481 = vmatmul.mubr.bf16.gmra.mrb[0].mxu0 %v290
        %v482 = vpop.f32.mrb[0].mxu0
        %v483 = vadd.f32 0.0, %v482
        %v484 = vpop.f32.mrb[0].mxu0
        %v485 = vadd.f32 0.0, %v484
        %v486 = vpop.f32.mrb[0].mxu0
        %v487 = vadd.f32 0.0, %v486
        %v488 = vpop.f32.mrb[0].mxu0
        %v489 = vadd.f32 0.0, %v488
        %490 = vmatprep.mubr.bf16.mxu0 0
        %491 = vmatmul.mubr.bf16.gmra.mrb[0].mxu0 %v291
        %v492 = vpop.f32.mrb[0].mxu0
        %v493 = vadd.f32 0.0, %v492
        %v494 = vpop.f32.mrb[0].mxu0
        %v495 = vadd.f32 0.0, %v494
        %v496 = vpop.f32.mrb[0].mxu0
        %v497 = vadd.f32 0.0, %v496
        %v498 = vpop.f32.mrb[0].mxu0
        %v499 = vadd.f32 0.0, %v498
        %500 = vdwg.mxu0
        %v501 = vpack.c.bf16 %v429, %v425
        %v502 = vpack.c.bf16 %v439, %v435
        %v503 = vpack.c.bf16 %v449, %v445
        %v504 = vpack.c.bf16 %v459, %v455
        %v505 = vpack.c.bf16 %v469, %v465
        %v506 = vpack.c.bf16 %v479, %v475
        %v507 = vpack.c.bf16 %v489, %v485
        %v508 = vpack.c.bf16 %v499, %v495
        %v509 = vld [vmem:[%s0] sm:$0xff]
        %v510 = vld [vmem:[%s0 + $0x8] sm:$0xff]
        %v511 = vld [vmem:[%s0 + $0x10] sm:$0xff]
        %v512 = vld [vmem:[%s0 + $0x18] sm:$0xff]
        %v513 = vunpack.c.l.s8.bf16 %v509
        %v514 = vunpack.c.h.s8.bf16 %v509
        %v515 = vunpack.c.l.s8.bf16 %v510
        %v516 = vunpack.c.h.s8.bf16 %v510
        %v517 = vunpack.c.l.s8.bf16 %v511
        %v518 = vunpack.c.h.s8.bf16 %v511
        %v519 = vunpack.c.l.s8.bf16 %v512
        %v520 = vunpack.c.h.s8.bf16 %v512
        %521 = vmatprep.subr.bf16.mxu0 0
        %522 = vmatpush1.bf16.msra.mxu0 %v501
        %523 = vmatprep.subr.bf16.mxu0 0
        %524 = vmatpush1.bf16.msra.mxu0 %v502
        %525 = vmatprep.subr.bf16.mxu0 0
        %526 = vmatpush1.bf16.msra.mxu0 %v503
        %527 = vmatprep.subr.bf16.mxu0 0
        %528 = vmatpush1.bf16.msra.mxu0 %v504
        %529 = vmatprep.subr.bf16.mxu0 0
        %530 = vmatpush1.bf16.msra.mxu0 %v505
        %531 = vmatprep.subr.bf16.mxu0 0
        %532 = vmatpush1.bf16.msra.mxu0 %v506
        %533 = vmatprep.subr.bf16.mxu0 0
        %534 = vmatpush1.bf16.msra.mxu0 %v507
        %535 = vmatprep.subr.bf16.mxu0 0
        %536 = vmatpush1.bf16.msra.mxu0 %v508
        %537 = vmatprep.subr.bf16.mxu0 0
        %538 = vmatpush1.bf16.msra.mxu0 0
        %539 = vmatprep.subr.bf16.mxu0 0
        %540 = vmatpush1.bf16.msra.mxu0 0
        %541 = vmatprep.subr.bf16.mxu0 0
        %542 = vmatpush1.bf16.msra.mxu0 0
        %543 = vmatprep.subr.bf16.mxu0 0
        %544 = vmatpush1.bf16.msra.mxu0 0
        %545 = vmatprep.subr.bf16.mxu0 0
        %546 = vmatpush1.bf16.msra.mxu0 0
        %547 = vmatprep.subr.bf16.mxu0 0
        %548 = vmatpush1.bf16.msra.mxu0 0
        %549 = vmatprep.subr.bf16.mxu0 0
        %550 = vmatpush1.bf16.msra.mxu0 0
        %551 = vmatprep.subr.bf16.mxu0 0
        %552 = vmatpush1.bf16.msra.mxu0 0
        %553 = vmatprep.mubr.bf16.mxu0 0
        %554 = vmatmul.mubr.bf16.gmra.mrb[0].mxu0 %v513
        %v555 = vpop.f32.mrb[0].mxu0
        %v556 = vadd.f32 0.0, %v555
        %v557 = vpop.f32.mrb[0].mxu0
        %v558 = vpop.f32.mrb[0].mxu0
        %v559 = vadd.f32 0.0, %v558
        %v560 = vpop.f32.mrb[0].mxu0
        %561 = vmatprep.mubr.bf16.mxu0 0
        %562 = vmatmul.mubr.bf16.gmra.mrb[0].mxu0 %v514
        %v563 = vpop.f32.mrb[0].mxu0
        %v564 = vadd.f32 0.0, %v563
        %v565 = vpop.f32.mrb[0].mxu0
        %v566 = vpop.f32.mrb[0].mxu0
        %v567 = vadd.f32 0.0, %v566
        %v568 = vpop.f32.mrb[0].mxu0
        %569 = vmatprep.mubr.bf16.mxu0 0
        %570 = vmatmul.mubr.bf16.gmra.mrb[0].mxu0 %v515
        %v571 = vpop.f32.mrb[0].mxu0
        %v572 = vadd.f32 0.0, %v571
        %v573 = vpop.f32.mrb[0].mxu0
        %v574 = vpop.f32.mrb[0].mxu0
        %v575 = vadd.f32 0.0, %v574
        %v576 = vpop.f32.mrb[0].mxu0
        %577 = vmatprep.mubr.bf16.mxu0 0
        %578 = vmatmul.mubr.bf16.gmra.mrb[0].mxu0 %v516
        %v579 = vpop.f32.mrb[0].mxu0
        %v580 = vadd.f32 0.0, %v579
        %v581 = vpop.f32.mrb[0].mxu0
        %v582 = vpop.f32.mrb[0].mxu0
        %v583 = vadd.f32 0.0, %v582
        %v584 = vpop.f32.mrb[0].mxu0
        %585 = vmatprep.mubr.bf16.mxu0 0
        %586 = vmatmul.mubr.bf16.gmra.mrb[0].mxu0 %v517
        %v587 = vpop.f32.mrb[0].mxu0
        %v588 = vadd.f32 0.0, %v587
        %v589 = vpop.f32.mrb[0].mxu0
        %v590 = vpop.f32.mrb[0].mxu0
        %v591 = vadd.f32 0.0, %v590
        %v592 = vpop.f32.mrb[0].mxu0
        %593 = vmatprep.mubr.bf16.mxu0 0
        %594 = vmatmul.mubr.bf16.gmra.mrb[0].mxu0 %v518
        %v595 = vpop.f32.mrb[0].mxu0
        %v596 = vadd.f32 0.0, %v595
        %v597 = vpop.f32.mrb[0].mxu0
        %v598 = vpop.f32.mrb[0].mxu0
        %v599 = vadd.f32 0.0, %v598
        %v600 = vpop.f32.mrb[0].mxu0
        %601 = vmatprep.mubr.bf16.mxu0 0
        %602 = vmatmul.mubr.bf16.gmra.mrb[0].mxu0 %v519
        %v603 = vpop.f32.mrb[0].mxu0
        %v604 = vadd.f32 0.0, %v603
        %v605 = vpop.f32.mrb[0].mxu0
        %v606 = vpop.f32.mrb[0].mxu0
        %v607 = vadd.f32 0.0, %v606
        %v608 = vpop.f32.mrb[0].mxu0
        %609 = vmatprep.mubr.bf16.mxu0 0
        %610 = vmatmul.mubr.bf16.gmra.mrb[0].mxu0 %v520
        %v611 = vpop.f32.mrb[0].mxu0
        %v612 = vadd.f32 0.0, %v611
        %v613 = vpop.f32.mrb[0].mxu0
        %v614 = vpop.f32.mrb[0].mxu0
        %v615 = vadd.f32 0.0, %v614
        %v616 = vpop.f32.mrb[0].mxu0
        %617 = vdwg.mxu0
        %v618 = vld [vmem:[%s218] sm:$0x1]
        %v619 = vld [vmem:[%s2] sm:$0xff]
        %v620 = vld [vmem:[%s2 + $0x8] sm:$0xff]
        %v621 = vld [vmem:[%s2 + $0x10] sm:$0xff]
        %v622 = vld [vmem:[%s2 + $0x18] sm:$0xff]
        %v623 = vld [vmem:[%s2 + $0x20] sm:$0xff]
        %v624 = vld [vmem:[%s2 + $0x28] sm:$0xff]
        %v625 = vld [vmem:[%s2 + $0x30] sm:$0xff]
        %v626 = vld [vmem:[%s2 + $0x38] sm:$0xff]
        %v627 = vld [vmem:[%s2 + $0x40] sm:$0xff]
        %v628 = vld [vmem:[%s2 + $0x48] sm:$0xff]
        %v629 = vld [vmem:[%s2 + $0x50] sm:$0xff]
        %v630 = vld [vmem:[%s2 + $0x58] sm:$0xff]
        %v631 = vld [vmem:[%s2 + $0x60] sm:$0xff]
        %v632 = vld [vmem:[%s2 + $0x68] sm:$0xff]
        %v633 = vld [vmem:[%s2 + $0x70] sm:$0xff]
        %v634 = vld [vmem:[%s2 + $0x78] sm:$0xff]
        %636 = vset.pattern.permute.xlu0 0
        %637 = vperm.xlu0 %636, %v619
        %v638 = vpop.permute.xlu0 %637
        %641 = vset.pattern.permute.xlu0 0
        %642 = vperm.xlu0 %641, %v620
        %v643 = vpop.permute.xlu0 %642
        %646 = vset.pattern.permute.xlu0 0
        %647 = vperm.xlu0 %646, %v621
        %v648 = vpop.permute.xlu0 %647
        %651 = vset.pattern.permute.xlu0 0
        %652 = vperm.xlu0 %651, %v622
        %v653 = vpop.permute.xlu0 %652
        %656 = vset.pattern.permute.xlu0 0
        %657 = vperm.xlu0 %656, %v623
        %v658 = vpop.permute.xlu0 %657
        %661 = vset.pattern.permute.xlu0 0
        %662 = vperm.xlu0 %661, %v624
        %v663 = vpop.permute.xlu0 %662
        %666 = vset.pattern.permute.xlu0 0
        %667 = vperm.xlu0 %666, %v625
        %v668 = vpop.permute.xlu0 %667
        %671 = vset.pattern.permute.xlu0 0
        %672 = vperm.xlu0 %671, %v626
        %v673 = vpop.permute.xlu0 %672
        %676 = vset.pattern.permute.xlu0 0
        %677 = vperm.xlu0 %676, %v627
        %v678 = vpop.permute.xlu0 %677
        %681 = vset.pattern.permute.xlu0 0
        %682 = vperm.xlu0 %681, %v628
        %v683 = vpop.permute.xlu0 %682
        %686 = vset.pattern.permute.xlu0 0
        %687 = vperm.xlu0 %686, %v629
        %v688 = vpop.permute.xlu0 %687
        %691 = vset.pattern.permute.xlu0 0
        %692 = vperm.xlu0 %691, %v630
        %v693 = vpop.permute.xlu0 %692
        %696 = vset.pattern.permute.xlu0 0
        %697 = vperm.xlu0 %696, %v631
        %v698 = vpop.permute.xlu0 %697
        %701 = vset.pattern.permute.xlu0 0
        %702 = vperm.xlu0 %701, %v632
        %v703 = vpop.permute.xlu0 %702
        %706 = vset.pattern.permute.xlu0 0
        %707 = vperm.xlu0 %706, %v633
        %v708 = vpop.permute.xlu0 %707
        %711 = vset.pattern.permute.xlu0 0
        %712 = vperm.xlu0 %711, %v634
        %v713 = vpop.permute.xlu0 %712
        %v715 = vmul.f32 %v638, %v556
        %v716 = vmul.f32 %v643, %v559
        %v717 = vmul.f32 %v648, %v564
        %v718 = vmul.f32 %v653, %v567
        %v719 = vmul.f32 %v658, %v572
        %v720 = vmul.f32 %v663, %v575
        %v721 = vmul.f32 %v668, %v580
        %v722 = vmul.f32 %v673, %v583
        %v723 = vmul.f32 %v678, %v588
        %v724 = vmul.f32 %v683, %v591
        %v725 = vmul.f32 %v688, %v596
        %v726 = vmul.f32 %v693, %v599
        %v727 = vmul.f32 %v698, %v604
        %v728 = vmul.f32 %v703, %v607
        %v729 = vmul.f32 %v708, %v612
        %v730 = vmul.f32 %v713, %v615
        %v731 = vadd.f32 %v423, %v715
        %v732 = vadd.f32 %v427, %v716
        %v733 = vadd.f32 %v433, %v717
        %v734 = vadd.f32 %v437, %v718
        %v735 = vadd.f32 %v443, %v719
        %v736 = vadd.f32 %v447, %v720
        %v737 = vadd.f32 %v453, %v721
        %v738 = vadd.f32 %v457, %v722
        %v739 = vadd.f32 %v463, %v723
        %v740 = vadd.f32 %v467, %v724
        %v741 = vadd.f32 %v473, %v725
        %v742 = vadd.f32 %v477, %v726
        %v743 = vadd.f32 %v483, %v727
        %v744 = vadd.f32 %v487, %v728
        %v745 = vadd.f32 %v493, %v729
        %v746 = vadd.f32 %v497, %v730
        %v748 = vlaneseq
        %v749 = vshrl.u32 %v748, 7
        %v750 = vsub.s32 0, %v749
        %v751 = vrot.slane %v618, %v750
        %v753 = vadd.f32 %v731, %v751
        %v754 = vadd.f32 %v732, %v751
        %v755 = vadd.f32 %v733, %v751
        %v756 = vadd.f32 %v734, %v751
        %v757 = vadd.f32 %v735, %v751
        %v758 = vadd.f32 %v736, %v751
        %v759 = vadd.f32 %v737, %v751
        %v760 = vadd.f32 %v738, %v751
        %v761 = vadd.f32 %v739, %v751
        %v762 = vadd.f32 %v740, %v751
        %v763 = vadd.f32 %v741, %v751
        %v764 = vadd.f32 %v742, %v751
        %v765 = vadd.f32 %v743, %v751
        %v766 = vadd.f32 %v744, %v751
        %v767 = vadd.f32 %v745, %v751
        %v768 = vadd.f32 %v746, %v751
        %p769 = scmp.ne.s32.totalorder %s20, 2
        // Predicated region
        $region79: #{tpu_custom_call.1} parent=35 // pred_check
          %p770 = pneg %p769
        $region80: #{tpu_custom_call.1} parent=35 // pred_check_branch
          %772 = sbr.rel (%p770) target = $region82
        $region81: #{tpu_custom_call.1} parent=35 // pred_region
          %v773 = vmax.f32 %v753, 0.0
          %v774 = vmax.f32 %v754, 0.0
          %v775 = vmax.f32 %v755, 0.0
          %v776 = vmax.f32 %v756, 0.0
          %v777 = vmax.f32 %v757, 0.0
          %v778 = vmax.f32 %v758, 0.0
          %v779 = vmax.f32 %v759, 0.0
          %v780 = vmax.f32 %v760, 0.0
          %v781 = vmax.f32 %v761, 0.0
          %v782 = vmax.f32 %v762, 0.0
          %v783 = vmax.f32 %v763, 0.0
          %v784 = vmax.f32 %v764, 0.0
          %v785 = vmax.f32 %v765, 0.0
          %v786 = vmax.f32 %v766, 0.0
          %v787 = vmax.f32 %v767, 0.0
          %v788 = vmax.f32 %v768, 0.0
          %v789 = vpack.c.bf16 %v774, %v773
          %v790 = vpack.c.bf16 %v776, %v775
          %v791 = vpack.c.bf16 %v778, %v777
          %v792 = vpack.c.bf16 %v780, %v779
          %v793 = vpack.c.bf16 %v782, %v781
          %v794 = vpack.c.bf16 %v784, %v783
          %v795 = vpack.c.bf16 %v786, %v785
          %v796 = vpack.c.bf16 %v788, %v787
          %797 = vst [vmem:[#allocation2] sm:$0xff] %v789
          %798 = vst [vmem:[#allocation2 + $0x8] sm:$0xff] %v790
          %799 = vst [vmem:[#allocation2 + $0x10] sm:$0xff] %v791
          %800 = vst [vmem:[#allocation2 + $0x18] sm:$0xff] %v792
          %801 = vst [vmem:[#allocation2 + $0x20] sm:$0xff] %v793
          %802 = vst [vmem:[#allocation2 + $0x28] sm:$0xff] %v794
          %803 = vst [vmem:[#allocation2 + $0x30] sm:$0xff] %v795
          %804 = vst [vmem:[#allocation2 + $0x38] sm:$0xff] %v796
        $region82: #{tpu_custom_call.1} parent=35 // pred_fallthru
          _
        %p805 = scmp.eq.s32.totalorder %s20, 2
        // Predicated region
        $region83: #{tpu_custom_call.1} parent=35 // pred_check
          %p806 = pneg %p805
        $region84: #{tpu_custom_call.1} parent=35 // pred_check_branch
          %808 = sbr.rel (%p806) target = $region86
        $region85: #{tpu_custom_call.1} parent=35 // pred_region
          %v809 = vlaneseq
          %v810 = vand.u32 %v809, 127
          %vm811 = vcmp.lt.s32.totalorder %v810, 8
          %v812 = vsel %vm811, %v753, -1e+30
          %v813 = vsel %vm811, %v754, -1e+30
          %v814 = vsel %vm811, %v755, -1e+30
          %v815 = vsel %vm811, %v756, -1e+30
          %v816 = vsel %vm811, %v757, -1e+30
          %v817 = vsel %vm811, %v758, -1e+30
          %v818 = vsel %vm811, %v759, -1e+30
          %v819 = vsel %vm811, %v760, -1e+30
          %v820 = vsel %vm811, %v761, -1e+30
          %v821 = vsel %vm811, %v762, -1e+30
          %v822 = vsel %vm811, %v763, -1e+30
          %v823 = vsel %vm811, %v764, -1e+30
          %v824 = vsel %vm811, %v765, -1e+30
          %v825 = vsel %vm811, %v766, -1e+30
          %v826 = vsel %vm811, %v767, -1e+30
          %v827 = vsel %vm811, %v768, -1e+30
          %828 = vmax.xlane.f32.xlu0 %v812
          %v829 = vpop.xlane.xlu0 %828
          %830 = vmax.xlane.f32.xlu0 %v813
          %v831 = vpop.xlane.xlu0 %830
          %832 = vmax.xlane.f32.xlu0 %v814
          %v833 = vpop.xlane.xlu0 %832
          %834 = vmax.xlane.f32.xlu0 %v815
          %v835 = vpop.xlane.xlu0 %834
          %836 = vmax.xlane.f32.xlu0 %v816
          %v837 = vpop.xlane.xlu0 %836
          %838 = vmax.xlane.f32.xlu0 %v817
          %v839 = vpop.xlane.xlu0 %838
          %840 = vmax.xlane.f32.xlu0 %v818
          %v841 = vpop.xlane.xlu0 %840
          %842 = vmax.xlane.f32.xlu0 %v819
          %v843 = vpop.xlane.xlu0 %842
          %844 = vmax.xlane.f32.xlu0 %v820
          %v845 = vpop.xlane.xlu0 %844
          %846 = vmax.xlane.f32.xlu0 %v821
          %v847 = vpop.xlane.xlu0 %846
          %848 = vmax.xlane.f32.xlu0 %v822
          %v849 = vpop.xlane.xlu0 %848
          %850 = vmax.xlane.f32.xlu0 %v823
          %v851 = vpop.xlane.xlu0 %850
          %852 = vmax.xlane.f32.xlu0 %v824
          %v853 = vpop.xlane.xlu0 %852
          %854 = vmax.xlane.f32.xlu0 %v825
          %v855 = vpop.xlane.xlu0 %854
          %856 = vmax.xlane.f32.xlu0 %v826
          %v857 = vpop.xlane.xlu0 %856
          %858 = vmax.xlane.f32.xlu0 %v827
          %v859 = vpop.xlane.xlu0 %858
          %v860 = vsub.f32 %v812, %v829
          %v861 = vsub.f32 %v813, %v831
          %v862 = vsub.f32 %v814, %v833
          %v863 = vsub.f32 %v815, %v835
          %v864 = vsub.f32 %v816, %v837
          %v865 = vsub.f32 %v817, %v839
          %v866 = vsub.f32 %v818, %v841
          %v867 = vsub.f32 %v819, %v843
          %v868 = vsub.f32 %v820, %v845
          %v869 = vsub.f32 %v821, %v847
          %v870 = vsub.f32 %v822, %v849
          %v871 = vsub.f32 %v823, %v851
          %v872 = vsub.f32 %v824, %v853
          %v873 = vsub.f32 %v825, %v855
          %v874 = vsub.f32 %v826, %v857
          %v875 = vsub.f32 %v827, %v859
          %v876 = vmul.f32 %v860, 1.442695
          %v877 = vpow.pop %v876
          %v878 = vmul.f32 %v861, 1.442695
          %v879 = vpow.pop %v878
          %v880 = vmul.f32 %v862, 1.442695
          %v881 = vpow.pop %v880
          %v882 = vmul.f32 %v863, 1.442695
          %v883 = vpow.pop %v882
          %v884 = vmul.f32 %v864, 1.442695
          %v885 = vpow.pop %v884
          %v886 = vmul.f32 %v865, 1.442695
          %v887 = vpow.pop %v886
          %v888 = vmul.f32 %v866, 1.442695
          %v889 = vpow.pop %v888
          %v890 = vmul.f32 %v867, 1.442695
          %v891 = vpow.pop %v890
          %v892 = vmul.f32 %v868, 1.442695
          %v893 = vpow.pop %v892
          %v894 = vmul.f32 %v869, 1.442695
          %v895 = vpow.pop %v894
          %v896 = vmul.f32 %v870, 1.442695
          %v897 = vpow.pop %v896
          %v898 = vmul.f32 %v871, 1.442695
          %v899 = vpow.pop %v898
          %v900 = vmul.f32 %v872, 1.442695
          %v901 = vpow.pop %v900
          %v902 = vmul.f32 %v873, 1.442695
          %v903 = vpow.pop %v902
          %v904 = vmul.f32 %v874, 1.442695
          %v905 = vpow.pop %v904
          %v906 = vmul.f32 %v875, 1.442695
          %v907 = vpow.pop %v906
          %908 = vadd.xlane.f32.xlu0 %v877
          %v909 = vpop.xlane.xlu0 %908
          %910 = vadd.xlane.f32.xlu0 %v879
          %v911 = vpop.xlane.xlu0 %910
          %912 = vadd.xlane.f32.xlu0 %v881
          %v913 = vpop.xlane.xlu0 %912
          %914 = vadd.xlane.f32.xlu0 %v883
          %v915 = vpop.xlane.xlu0 %914
          %916 = vadd.xlane.f32.xlu0 %v885
          %v917 = vpop.xlane.xlu0 %916
          %918 = vadd.xlane.f32.xlu0 %v887
          %v919 = vpop.xlane.xlu0 %918
          %920 = vadd.xlane.f32.xlu0 %v889
          %v921 = vpop.xlane.xlu0 %920
          %922 = vadd.xlane.f32.xlu0 %v891
          %v923 = vpop.xlane.xlu0 %922
          %924 = vadd.xlane.f32.xlu0 %v893
          %v925 = vpop.xlane.xlu0 %924
          %926 = vadd.xlane.f32.xlu0 %v895
          %v927 = vpop.xlane.xlu0 %926
          %928 = vadd.xlane.f32.xlu0 %v897
          %v929 = vpop.xlane.xlu0 %928
          %930 = vadd.xlane.f32.xlu0 %v899
          %v931 = vpop.xlane.xlu0 %930
          %932 = vadd.xlane.f32.xlu0 %v901
          %v933 = vpop.xlane.xlu0 %932
          %934 = vadd.xlane.f32.xlu0 %v903
          %v935 = vpop.xlane.xlu0 %934
          %936 = vadd.xlane.f32.xlu0 %v905
          %v937 = vpop.xlane.xlu0 %936
          %938 = vadd.xlane.f32.xlu0 %v907
          %v939 = vpop.xlane.xlu0 %938
          %v940 = vlog2.pop %v909
          %v941 = vmul.f32 %v940, 0.6931472
          %v942 = vlog2.pop %v911
          %v943 = vmul.f32 %v942, 0.6931472
          %v944 = vlog2.pop %v913
          %v945 = vmul.f32 %v944, 0.6931472
          %v946 = vlog2.pop %v915
          %v947 = vmul.f32 %v946, 0.6931472
          %v948 = vlog2.pop %v917
          %v949 = vmul.f32 %v948, 0.6931472
          %v950 = vlog2.pop %v919
          %v951 = vmul.f32 %v950, 0.6931472
          %v952 = vlog2.pop %v921
          %v953 = vmul.f32 %v952, 0.6931472
          %v954 = vlog2.pop %v923
          %v955 = vmul.f32 %v954, 0.6931472
          %v956 = vlog2.pop %v925
          %v957 = vmul.f32 %v956, 0.6931472
          %v958 = vlog2.pop %v927
          %v959 = vmul.f32 %v958, 0.6931472
          %v960 = vlog2.pop %v929
          %v961 = vmul.f32 %v960, 0.6931472
          %v962 = vlog2.pop %v931
          %v963 = vmul.f32 %v962, 0.6931472
          %v964 = vlog2.pop %v933
          %v965 = vmul.f32 %v964, 0.6931472
          %v966 = vlog2.pop %v935
          %v967 = vmul.f32 %v966, 0.6931472
          %v968 = vlog2.pop %v937
          %v969 = vmul.f32 %v968, 0.6931472
          %v970 = vlog2.pop %v939
          %v971 = vmul.f32 %v970, 0.6931472
          %v972 = vsub.f32 %v860, %v941
          %v973 = vsub.f32 %v861, %v943
          %v974 = vsub.f32 %v862, %v945
          %v975 = vsub.f32 %v863, %v947
          %v976 = vsub.f32 %v864, %v949
          %v977 = vsub.f32 %v865, %v951
          %v978 = vsub.f32 %v866, %v953
          %v979 = vsub.f32 %v867, %v955
          %v980 = vsub.f32 %v868, %v957
          %v981 = vsub.f32 %v869, %v959
          %v982 = vsub.f32 %v870, %v961
          %v983 = vsub.f32 %v871, %v963
          %v984 = vsub.f32 %v872, %v965
          %v985 = vsub.f32 %v873, %v967
          %v986 = vsub.f32 %v874, %v969
          %v987 = vsub.f32 %v875, %v971
          %988 = vst [vmem:[#allocation7] sm:$0xff] %v972
          %989 = vst [vmem:[#allocation7 + $0x8] sm:$0xff] %v973
          %990 = vst [vmem:[#allocation7 + $0x10] sm:$0xff] %v974
          %991 = vst [vmem:[#allocation7 + $0x18] sm:$0xff] %v975
          %992 = vst [vmem:[#allocation7 + $0x20] sm:$0xff] %v976
          %993 = vst [vmem:[#allocation7 + $0x28] sm:$0xff] %v977
          %994 = vst [vmem:[#allocation7 + $0x30] sm:$0xff] %v978
          %995 = vst [vmem:[#allocation7 + $0x38] sm:$0xff] %v979
          %996 = vst [vmem:[#allocation7 + $0x40] sm:$0xff] %v980
          %997 = vst [vmem:[#allocation7 + $0x48] sm:$0xff] %v981
          %998 = vst [vmem:[#allocation7 + $0x50] sm:$0xff] %v982
          %999 = vst [vmem:[#allocation7 + $0x58] sm:$0xff] %v983
          %1000 = vst [vmem:[#allocation7 + $0x60] sm:$0xff] %v984
          %1001 = vst [vmem:[#allocation7 + $0x68] sm:$0xff] %v985
          %1002 = vst [vmem:[#allocation7 + $0x70] sm:$0xff] %v986
          %1003 = vst [vmem:[#allocation7 + $0x78] sm:$0xff] %v987
        $region86: #{tpu_custom_call.1} parent=35 // pred_fallthru
          _
        // Predicated region
        $region87: #{tpu_custom_call.1} parent=35 // pred_check
          %p1004 = pneg %p127
        $region88: #{tpu_custom_call.1} parent=35 // pred_check_branch
          %1006 = sbr.rel (%p1004) target = $region90
        $region89: #{tpu_custom_call.1} parent=35 // pred_region
          %s1008 = ssub.s32 2048, 2048
          %1009 = vsyncadd [#allocation6], %s1008
          %s1010 = sshll.u32 [#allocation7], 4
          %s1011 = int_to_ptr.vmem [resolvable:$true] %s1010
          %1016 = dma.vmem_to_hbm [thread:$0]  %s1011, 2048, %s5, [#allocation6], 128, 128, 8
        $region90: #{tpu_custom_call.1} parent=35 // pred_fallthru
          _
        // Predicated region
        $region91: #{tpu_custom_call.1} parent=35 // pred_check
          %p1017 = pneg %p127
        $region92: #{tpu_custom_call.1} parent=35 // pred_check_branch
          %1019 = sbr.rel (%p1017) target = $region94
        $region93: #{tpu_custom_call.1} parent=35 // pred_region
          %1020 = dma.done [#allocation6], 2048
        $region94: #{tpu_custom_call.1} parent=35 // pred_fallthru
          _
      $region36: #{tpu_custom_call.1} parent=5 // pred_fallthru
        _
      %p1021 = scmp.le.s32.totalorder 2, %s15
      // Predicated region
      $region95: #{tpu_custom_call.1} parent=5 // pred_check
        %p1022 = pneg %p1021
      $region96: #{tpu_custom_call.1} parent=5 // pred_check_branch
        %1024 = sbr.rel (%p1022) target = $region98
      $region97: #{tpu_custom_call.1} parent=5 // pred_region
        %s1025 = ssub.s32 %s15, 2
      $region98: #{tpu_custom_call.1} parent=5 // pred_fallthru
        _
    $region6: #{tpu_custom_call.1} parent=1 // loop_footer
      %s19 = sadd.s32 1, %s15
    $region7: #{tpu_custom_call.1} parent=1 // loop_footer_branch
      %14 = sbr.rel target = $region3
    $region8: #{tpu_custom_call.1} parent=1 // loop_exit
      _
    %1026 = vsyncpa [#allocation5], 1
    %s1027 = scalar_lea.sflag [#allocation5], 1
    %1028 = vsyncpa %s1027, 1
    %1029 = vsyncpa [#allocation6], 1
    %s1030 = scalar_lea.sflag [#allocation6], 1
    %1031 = vsyncpa %s1030, 1
  %1032 = vsyncmov [#allocation3]
  %s1033 = vpop.sfrf %1032
  %p1034 = scmp.eq.s32.totalorder %s1033, 0
  %p1035 = pneg %p1034
  %1037 = shalt.err (%p1035)

</llo_original>
